<compile_context>
chip_gen: v7x
topology: tpu7x:2x2x1
jax: 0.10.0
libtpu: 0.0.40
codegen_flags: <defaults>
</compile_context>

<pallas_src>
import functools

import jax
import jax.numpy as jnp
from jax.experimental import pallas as pl
from jax.experimental.pallas import tpu as pltpu


def _round_up(x, m):
    return (x + m - 1) // m * m


def ffn_kernel(x_ref, gamma_ref, beta_ref, w1_ref, b1_ref, w2_ref, b2_ref,
               o_ref, xn_ref, acc_ref, *, d_in):
    k = pl.program_id(1)

    @pl.when(k == 0)
    def _():
        x = x_ref[...].astype(jnp.float32)                    # (tm, d_in_p)
        # LayerNorm over the *real* feature width d_in.  Padded lanes of x are
        # zero, so plain sums are exact; E[x^2] - mean^2 keeps the divisor d_in.
        inv_d = 1.0 / d_in
        s1 = jnp.sum(x, axis=-1, keepdims=True)
        s2 = jnp.sum(x * x, axis=-1, keepdims=True)
        mean = s1 * inv_d
        var = s2 * inv_d - mean * mean
        xn = (x - mean) * jax.lax.rsqrt(var + 1e-6)
        # gamma/beta are zero-padded -> padded lanes of xn are exactly 0.
        xn = xn * gamma_ref[...].astype(jnp.float32) + beta_ref[...].astype(jnp.float32)
        xn_ref[...] = xn.astype(xn_ref.dtype)                 # bf16 MXU operand
        acc_ref[...] = jnp.zeros_like(acc_ref)

    # --- w_1 chunk (d_in_p -> tk) , ReLU , w_2 chunk (tk -> d_in_p) ---
    h = jnp.dot(xn_ref[...], w1_ref[...], preferred_element_type=jnp.float32)
    h = jnp.maximum(h + b1_ref[...].astype(jnp.float32), 0.0)  # f32 epilogue
    acc_ref[...] += jnp.dot(h.astype(jnp.bfloat16), w2_ref[...],
                            preferred_element_type=jnp.float32)

    @pl.when(k == pl.num_programs(1) - 1)
    def _():
        # dropout (inference: identity) + bias + residual, all in f32.
        y = acc_ref[...] + b2_ref[...].astype(jnp.float32) + x_ref[...].astype(jnp.float32)
        o_ref[...] = y.astype(o_ref.dtype)


def positionwise_feed_forward(x, gamma, beta, w1, b1, w2, b2, *,
                              tm=256, tk_hid=512):
    """x: (B, S, d_in) -> (B, S, d_in)."""
    B, S, d_in = x.shape
    d_hid = w1.shape[1]
    N = B * S

    # ---- pad to TPU-friendly shapes (lane axis multiple of 128) ----
    d_in_p = _round_up(d_in, 128)
    d_hid_128 = _round_up(d_hid, 128)
    tk = _round_up(min(tk_hid, d_hid_128), 128)
    d_hid_p = _round_up(d_hid_128, tk)

    sub = 8 if x.dtype.itemsize == 4 else (16 if x.dtype.itemsize == 2 else 32)
    tm = _round_up(min(tm, _round_up(N, sub)), sub)
    N_p = _round_up(N, tm)

    x2d = jnp.pad(x.reshape(N, d_in), ((0, N_p - N), (0, d_in_p - d_in)))

    # Zero-padded params: padded lanes/rows contribute exactly 0.
    gamma_p = jnp.pad(gamma.reshape(1, d_in).astype(jnp.float32),
                      ((0, 0), (0, d_in_p - d_in)))
    beta_p = jnp.pad(beta.reshape(1, d_in).astype(jnp.float32),
                     ((0, 0), (0, d_in_p - d_in)))
    b1_p = jnp.pad(b1.reshape(1, d_hid).astype(jnp.float32),
                   ((0, 0), (0, d_hid_p - d_hid)))
    b2_p = jnp.pad(b2.reshape(1, d_in).astype(jnp.float32),
                   ((0, 0), (0, d_in_p - d_in)))
    # bf16 weight operands (f32 accumulation inside the kernel).
    w1_p = jnp.pad(w1.astype(jnp.float32),
                   ((0, d_in_p - d_in), (0, d_hid_p - d_hid))).astype(jnp.bfloat16)
    w2_p = jnp.pad(w2.astype(jnp.float32),
                   ((0, d_hid_p - d_hid), (0, d_in_p - d_in))).astype(jnp.bfloat16)

    grid = (N_p // tm, d_hid_p // tk)

    # Explicit VMEM budget with headroom (double-buffered varying blocks,
    # resident small params, scratch), clamped to a safe range.
    est = (2 * tm * d_in_p * x2d.dtype.itemsize     # x tile (double-buffered)
           + 2 * tm * d_in_p * x.dtype.itemsize     # out tile
           + 2 * d_in_p * tk * 2                    # w1 chunk (bf16)
           + 2 * tk * d_in_p * 2                    # w2 chunk (bf16)
           + tm * d_in_p * 2                        # xn scratch (bf16)
           + tm * d_in_p * 4                        # acc scratch (f32)
           + tm * tk * 4                            # h intermediate
           + 4 * d_in_p * 4 + 2 * tk * 4)           # gamma/beta/b1/b2
    vmem_limit = int(min(max(2 * est, 32 * 1024 * 1024), 100 * 1024 * 1024))

    kernel = functools.partial(ffn_kernel, d_in=d_in)

    out2d = pl.pallas_call(
        kernel,
        out_shape=jax.ShapeDtypeStruct((N_p, d_in_p), x.dtype),
        grid_spec=pltpu.PrefetchScalarGridSpec(
            num_scalar_prefetch=0,
            grid=grid,
            in_specs=[
                pl.BlockSpec((tm, d_in_p), lambda i, k: (i, 0)),   # x rows
                pl.BlockSpec((1, d_in_p), lambda i, k: (0, 0)),    # gamma
                pl.BlockSpec((1, d_in_p), lambda i, k: (0, 0)),    # beta
                pl.BlockSpec((d_in_p, tk), lambda i, k: (0, k)),   # w1 chunk
                pl.BlockSpec((1, tk), lambda i, k: (0, k)),        # b1 chunk
                pl.BlockSpec((tk, d_in_p), lambda i, k: (k, 0)),   # w2 chunk
                pl.BlockSpec((1, d_in_p), lambda i, k: (0, 0)),    # b2
            ],
            out_specs=pl.BlockSpec((tm, d_in_p), lambda i, k: (i, 0)),
            scratch_shapes=[
                pltpu.VMEM((tm, d_in_p), jnp.bfloat16),   # normalized rows (MXU lhs)
                pltpu.VMEM((tm, d_in_p), jnp.float32),    # f32 accumulator
            ],
        ),
        compiler_params=pltpu.CompilerParams(
            dimension_semantics=("parallel", "arbitrary"),
            vmem_limit_bytes=vmem_limit,
        ),
    )(x2d, gamma_p, beta_p, w1_p, b1_p, w2_p, b2_p)

    return out2d[:N, :d_in].reshape(B, S, d_in)


def make_params(key, d_in, d_hid, dtype=jnp.float32):
    """Deterministic synthetic parameters mirroring the module's __init__.

    w_1 / w_2 weights: xavier_normal_, biases: zeros (deterministic choice).
    layer_norm: gamma=1, beta=0 (PyTorch default).
    """
    k1, k2 = jax.random.split(key)
    std1 = (2.0 / (d_in + d_hid)) ** 0.5
    std2 = (2.0 / (d_hid + d_in)) ** 0.5
    w1 = (jax.random.normal(k1, (d_in, d_hid), jnp.float32) * std1).astype(dtype)
    w2 = (jax.random.normal(k2, (d_hid, d_in), jnp.float32) * std2).astype(dtype)
    b1 = jnp.zeros((1, d_hid), dtype)
    b2 = jnp.zeros((1, d_in), dtype)
    gamma = jnp.ones((1, d_in), dtype)
    beta = jnp.zeros((1, d_in), dtype)
    return gamma, beta, w1, b1, w2, b2


if __name__ == "__main__":
    key = jax.random.PRNGKey(0)
    kx, kp = jax.random.split(key)

    B, S, d_in, d_hid = 2, 8, 32, 64
    x = jax.random.normal(kx, (B, S, d_in), jnp.float32)
    gamma, beta, w1, b1, w2, b2 = make_params(kp, d_in, d_hid)

    out = positionwise_feed_forward(x, gamma, beta, w1, b1, w2, b2)
    out = jax.block_until_ready(out)
    assert out.shape == x.shape

    # Reference 1: mirrors the kernel's bf16-operand / f32-accumulate matmuls.
    def ref_bf16(x):
        xf = x.astype(jnp.float32)
        mean = jnp.mean(xf, axis=-1, keepdims=True)
        var = jnp.mean((xf - mean) ** 2, axis=-1, keepdims=True)
        xn = (xf - mean) * jax.lax.rsqrt(var + 1e-6) * gamma[0] + beta[0]
        h = jnp.dot(xn.astype(jnp.bfloat16), w1.astype(jnp.bfloat16),
                    preferred_element_type=jnp.float32) + b1[0]
        h = jnp.maximum(h, 0.0)
        y = jnp.dot(h.astype(jnp.bfloat16), w2.astype(jnp.bfloat16),
                    preferred_element_type=jnp.float32) + b2[0]
        return y + xf

    # Reference 2: pure-f32 PyTorch-semantics check (looser tol for bf16 dots).
    def ref_f32(x):
        mean = jnp.mean(x, axis=-1, keepdims=True)
        var = jnp.mean((x - mean) ** 2, axis=-1, keepdims=True)
        xn = (x - mean) / jnp.sqrt(var + 1e-6) * gamma[0] + beta[0]
        h = jnp.maximum(xn @ w1 + b1[0], 0.0)
        return h @ w2 + b2[0] + x

    assert jnp.allclose(out, ref_bf16(x), atol=5e-3, rtol=5e-3)
    assert jnp.allclose(out, ref_f32(x), atol=3e-2, rtol=3e-2)
    print("KERNEL_OK")
</pallas_src>

<mosaic_0001>
module attributes {stable_mosaic.version = 11 : i64} {
  func.func @ffn_kernel(%arg0: i32, %arg1: i32, %arg2: memref<16x128xf32, #tpu.memory_space<vmem>>, %arg3: memref<1x128xf32, #tpu.memory_space<vmem>>, %arg4: memref<1x128xf32, #tpu.memory_space<vmem>>, %arg5: memref<128x128xbf16, #tpu.memory_space<vmem>>, %arg6: memref<1x128xf32, #tpu.memory_space<vmem>>, %arg7: memref<128x128xbf16, #tpu.memory_space<vmem>>, %arg8: memref<1x128xf32, #tpu.memory_space<vmem>>, %arg9: memref<16x128xf32, #tpu.memory_space<vmem>>, %arg10: memref<16x128xbf16, #tpu.memory_space<vmem>>, %arg11: memref<16x128xf32, #tpu.memory_space<vmem>>) attributes {dimension_semantics = [#tpu.dimension_semantics<parallel>, #tpu.dimension_semantics<arbitrary>], iteration_bounds = array<i64: 1, 1>, scalar_prefetch = 0 : i64, scratch_operands = 2 : i64, tpu.core_type = #tpu.core_type<tc>, window_params = [{transform_indices = @transform_0, window_bounds = array<i64: 16, 128>}, {pipeline_mode = #tpu.pipeline_mode<synchronous>, transform_indices = @transform_1, window_bounds = array<i64: 1, 128>}, {pipeline_mode = #tpu.pipeline_mode<synchronous>, transform_indices = @transform_2, window_bounds = array<i64: 1, 128>}, {transform_indices = @transform_3, window_bounds = array<i64: 128, 128>}, {transform_indices = @transform_4, window_bounds = array<i64: 1, 128>}, {transform_indices = @transform_5, window_bounds = array<i64: 128, 128>}, {pipeline_mode = #tpu.pipeline_mode<synchronous>, transform_indices = @transform_6, window_bounds = array<i64: 1, 128>}, {transform_indices = @transform_7, window_bounds = array<i64: 16, 128>}]} {
    %c0_i32 = arith.constant 0 : i32
    %0 = arith.cmpi eq, %arg1, %c0_i32 : i32
    %1 = arith.extui %0 : i1 to i32
    %c0_i32_0 = arith.constant 0 : i32
    %2 = arith.cmpi ne, %1, %c0_i32_0 : i32
    scf.if %2 {
      %c0_16 = arith.constant 0 : index
      %c0_17 = arith.constant 0 : index
      %20 = vector.load %arg2[%c0_16, %c0_17] : memref<16x128xf32, #tpu.memory_space<vmem>>, vector<16x128xf32>
      %cst_18 = arith.constant dense<0.000000e+00> : vector<16xf32>
      %21 = vector.multi_reduction <add>, %20, %cst_18 [1] : vector<16x128xf32> to vector<16xf32>
      %22 = vector.shape_cast %21 : vector<16xf32> to vector<16x1xf32>
      %23 = arith.mulf %20, %20 : vector<16x128xf32>
      %cst_19 = arith.constant dense<0.000000e+00> : vector<16xf32>
      %24 = vector.multi_reduction <add>, %23, %cst_19 [1] : vector<16x128xf32> to vector<16xf32>
      %25 = vector.shape_cast %24 : vector<16xf32> to vector<16x1xf32>
      %cst_20 = arith.constant 3.125000e-02 : f32
      %26 = vector.broadcast %cst_20 : f32 to vector<16x1xf32>
      %27 = arith.mulf %22, %26 : vector<16x1xf32>
      %cst_21 = arith.constant 3.125000e-02 : f32
      %28 = vector.broadcast %cst_21 : f32 to vector<16x1xf32>
      %29 = arith.mulf %25, %28 : vector<16x1xf32>
      %30 = arith.mulf %27, %27 : vector<16x1xf32>
      %31 = arith.subf %29, %30 : vector<16x1xf32>
      %32 = vector.broadcast %27 : vector<16x1xf32> to vector<16x128xf32>
      %33 = arith.subf %20, %32 : vector<16x128xf32>
      %cst_22 = arith.constant 9.99999997E-7 : f32
      %34 = vector.broadcast %cst_22 : f32 to vector<16x1xf32>
      %35 = arith.addf %31, %34 : vector<16x1xf32>
      %36 = math.rsqrt %35 : vector<16x1xf32>
      %37 = vector.broadcast %36 : vector<16x1xf32> to vector<16x128xf32>
      %38 = arith.mulf %33, %37 : vector<16x128xf32>
      %c0_23 = arith.constant 0 : index
      %c0_24 = arith.constant 0 : index
      %39 = vector.load %arg3[%c0_23, %c0_24] : memref<1x128xf32, #tpu.memory_space<vmem>>, vector<1x128xf32>
      %40 = vector.broadcast %39 : vector<1x128xf32> to vector<16x128xf32>
      %41 = arith.mulf %38, %40 : vector<16x128xf32>
      %c0_25 = arith.constant 0 : index
      %c0_26 = arith.constant 0 : index
      %42 = vector.load %arg4[%c0_25, %c0_26] : memref<1x128xf32, #tpu.memory_space<vmem>>, vector<1x128xf32>
      %43 = vector.broadcast %42 : vector<1x128xf32> to vector<16x128xf32>
      %44 = arith.addf %41, %43 : vector<16x128xf32>
      %45 = arith.truncf %44 : vector<16x128xf32> to vector<16x128xbf16>
      %c0_27 = arith.constant 0 : index
      %c0_28 = arith.constant 0 : index
      %46 = vector.load %arg10[%c0_27, %c0_28] : memref<16x128xbf16, #tpu.memory_space<vmem>>, vector<16x128xbf16>
      tpu.vector_store %arg10[%c0_27, %c0_28], %45 {strides = array<i32>} : memref<16x128xbf16, #tpu.memory_space<vmem>>, vector<16x128xbf16>,
      %cst_29 = arith.constant 0.000000e+00 : f32
      %47 = vector.broadcast %cst_29 : f32 to vector<16x128xf32>
      %c0_30 = arith.constant 0 : index
      %c0_31 = arith.constant 0 : index
      %48 = vector.load %arg11[%c0_30, %c0_31] : memref<16x128xf32, #tpu.memory_space<vmem>>, vector<16x128xf32>
      tpu.vector_store %arg11[%c0_30, %c0_31], %47 {strides = array<i32>} : memref<16x128xf32, #tpu.memory_space<vmem>>, vector<16x128xf32>,
    } else {
    }
    %c0 = arith.constant 0 : index
    %c0_1 = arith.constant 0 : index
    %3 = vector.load %arg10[%c0, %c0_1] : memref<16x128xbf16, #tpu.memory_space<vmem>>, vector<16x128xbf16>
    %c0_2 = arith.constant 0 : index
    %c0_3 = arith.constant 0 : index
    %4 = vector.load %arg5[%c0_2, %c0_3] : memref<128x128xbf16, #tpu.memory_space<vmem>>, vector<128x128xbf16>
    %cst = arith.constant dense<0.000000e+00> : vector<16x128xf32>
    %5 = tpu.matmul %3, %4, %cst {dimension_numbers = #tpu.dot_dimension_numbers<[1], [0], [0], [1], [0, 0, 1, 1], [], []>} : vector<16x128xbf16>, vector<128x128xbf16>, vector<16x128xf32> -> vector<16x128xf32>
    %c0_4 = arith.constant 0 : index
    %c0_5 = arith.constant 0 : index
    %6 = vector.load %arg6[%c0_4, %c0_5] : memref<1x128xf32, #tpu.memory_space<vmem>>, vector<1x128xf32>
    %7 = vector.broadcast %6 : vector<1x128xf32> to vector<16x128xf32>
    %8 = arith.addf %5, %7 : vector<16x128xf32>
    %cst_6 = arith.constant 0.000000e+00 : f32
    %9 = vector.broadcast %cst_6 : f32 to vector<16x128xf32>
    %10 = arith.maximumf %8, %9 : vector<16x128xf32>
    %c0_7 = arith.constant 0 : index
    %c0_8 = arith.constant 0 : index
    %11 = vector.load %arg11[%c0_7, %c0_8] : memref<16x128xf32, #tpu.memory_space<vmem>>, vector<16x128xf32>
    %12 = arith.truncf %10 : vector<16x128xf32> to vector<16x128xbf16>
    %c0_9 = arith.constant 0 : index
    %c0_10 = arith.constant 0 : index
    %13 = vector.load %arg7[%c0_9, %c0_10] : memref<128x128xbf16, #tpu.memory_space<vmem>>, vector<128x128xbf16>
    %cst_11 = arith.constant dense<0.000000e+00> : vector<16x128xf32>
    %14 = tpu.matmul %12, %13, %cst_11 {dimension_numbers = #tpu.dot_dimension_numbers<[1], [0], [0], [1], [0, 0, 1, 1], [], []>} : vector<16x128xbf16>, vector<128x128xbf16>, vector<16x128xf32> -> vector<16x128xf32>
    %15 = arith.addf %11, %14 : vector<16x128xf32>
    %c0_12 = arith.constant 0 : index
    %c0_13 = arith.constant 0 : index
    %16 = vector.load %arg11[%c0_12, %c0_13] : memref<16x128xf32, #tpu.memory_space<vmem>>, vector<16x128xf32>
    tpu.vector_store %arg11[%c0_12, %c0_13], %15 {strides = array<i32>} : memref<16x128xf32, #tpu.memory_space<vmem>>, vector<16x128xf32>,
    %c0_i32_14 = arith.constant 0 : i32
    %17 = arith.cmpi eq, %arg1, %c0_i32_14 : i32
    %18 = arith.extui %17 : i1 to i32
    %c0_i32_15 = arith.constant 0 : i32
    %19 = arith.cmpi ne, %18, %c0_i32_15 : i32
    scf.if %19 {
      %c0_16 = arith.constant 0 : index
      %c0_17 = arith.constant 0 : index
      %20 = vector.load %arg11[%c0_16, %c0_17] : memref<16x128xf32, #tpu.memory_space<vmem>>, vector<16x128xf32>
      %c0_18 = arith.constant 0 : index
      %c0_19 = arith.constant 0 : index
      %21 = vector.load %arg8[%c0_18, %c0_19] : memref<1x128xf32, #tpu.memory_space<vmem>>, vector<1x128xf32>
      %22 = vector.broadcast %21 : vector<1x128xf32> to vector<16x128xf32>
      %23 = arith.addf %20, %22 : vector<16x128xf32>
      %c0_20 = arith.constant 0 : index
      %c0_21 = arith.constant 0 : index
      %24 = vector.load %arg2[%c0_20, %c0_21] : memref<16x128xf32, #tpu.memory_space<vmem>>, vector<16x128xf32>
      %25 = arith.addf %23, %24 : vector<16x128xf32>
      %c0_22 = arith.constant 0 : index
      %c0_23 = arith.constant 0 : index
      %26 = vector.load %arg9[%c0_22, %c0_23] : memref<16x128xf32, #tpu.memory_space<vmem>>, vector<16x128xf32>
      tpu.vector_store %arg9[%c0_22, %c0_23], %25 {strides = array<i32>} : memref<16x128xf32, #tpu.memory_space<vmem>>, vector<16x128xf32>,
    } else {
    }
    return
  }
  func.func @transform_0(%arg0: i32, %arg1: i32) -> (i32, i32) {
    %c0_i32 = arith.constant 0 : i32
    %c0_i32_0 = arith.constant 0 : i32
    return %arg0, %c0_i32 : i32, i32
  }
  func.func @transform_1(%arg0: i32, %arg1: i32) -> (i32, i32) {
    %c0_i32 = arith.constant 0 : i32
    %c0_i32_0 = arith.constant 0 : i32
    %c0_i32_1 = arith.constant 0 : i32
    return %c0_i32, %c0_i32_0 : i32, i32
  }
  func.func @transform_2(%arg0: i32, %arg1: i32) -> (i32, i32) {
    %c0_i32 = arith.constant 0 : i32
    %c0_i32_0 = arith.constant 0 : i32
    %c0_i32_1 = arith.constant 0 : i32
    return %c0_i32, %c0_i32_0 : i32, i32
  }
  func.func @transform_3(%arg0: i32, %arg1: i32) -> (i32, i32) {
    %c0_i32 = arith.constant 0 : i32
    %c0_i32_0 = arith.constant 0 : i32
    return %c0_i32, %arg1 : i32, i32
  }
  func.func @transform_4(%arg0: i32, %arg1: i32) -> (i32, i32) {
    %c0_i32 = arith.constant 0 : i32
    %c0_i32_0 = arith.constant 0 : i32
    return %c0_i32, %arg1 : i32, i32
  }
  func.func @transform_5(%arg0: i32, %arg1: i32) -> (i32, i32) {
    %c0_i32 = arith.constant 0 : i32
    %c0_i32_0 = arith.constant 0 : i32
    return %arg1, %c0_i32 : i32, i32
  }
  func.func @transform_6(%arg0: i32, %arg1: i32) -> (i32, i32) {
    %c0_i32 = arith.constant 0 : i32
    %c0_i32_0 = arith.constant 0 : i32
    %c0_i32_1 = arith.constant 0 : i32
    return %c0_i32, %c0_i32_0 : i32, i32
  }
  func.func @transform_7(%arg0: i32, %arg1: i32) -> (i32, i32) {
    %c0_i32 = arith.constant 0 : i32
    %c0_i32_0 = arith.constant 0 : i32
    return %arg0, %c0_i32 : i32, i32
  }
}

</mosaic_0001>

<llo_original>
// kernel: tpu_custom_call.1
$region0: #{tpu_custom_call.1}
  #allocation0 [shape = 'u32[]', space=smem, size = 0x4, offset = 0x4, fixed_abs, tag = 'smem constant byte address 0x4 - core index']
  #allocation1 [shape = 'u32[144,128]{1,0:T(1,128)}', space=vmem, size = 0x12000, scoped, tag = 'internal scratch']
  #allocation2 [shape = 'bf16[16,128]{1,0:T(16,128)(2,1)}', space=vmem, size = 0x1000, scoped, tag = 'scratch operand']
  #allocation3 [shape = 'f32[16,128]{1,0:T(8,128)}', space=vmem, size = 0x2000, scoped, tag = 'scratch operand']
  %s0 = inlined_call_operand.hbm [shape: f32[16,128], index: 0, kind: input, shape index: {}]
  %s1 = inlined_call_operand.vmem [shape: f32[1,128], index: 1, kind: input, shape index: {}]
  %s2 = inlined_call_operand.vmem [shape: f32[1,128], index: 2, kind: input, shape index: {}]
  %s3 = inlined_call_operand.hbm [shape: bf16[128,128], index: 3, kind: input, shape index: {}]
  %s4 = inlined_call_operand.vmem [shape: f32[1,128], index: 4, kind: input, shape index: {}]
  %s5 = inlined_call_operand.hbm [shape: bf16[128,128], index: 5, kind: input, shape index: {}]
  %s6 = inlined_call_operand.vmem [shape: f32[1,128], index: 6, kind: input, shape index: {}]
  %s7 = inlined_call_operand.hbm [shape: f32[16,128], index: 7, kind: output, shape index: {}]
  %s8 = sld [smem:[#allocation0]]
  $region58: #{tpu_custom_call.1} parent=0
    _
  %s10 = ssub.s32 1, %s8
  %s11 = scalar_select 0, %s10, %s8
  $region1: #{tpu_custom_call.1} parent=0
    #allocation4 [shape = 'u8[8192]{0}', space=vmem, size = 0x2000, scoped, tag = 'input window, operand 0, single buffered']
    #allocation5 [shape = 's32[1]{0}', space=sflag, size = 0x4, scoped, tag = 'scoped memory for tpu_custom_call.1']
    #allocation6 [shape = 's32[1]{0}', space=sflag, size = 0x4, scoped, tag = 'scoped memory for tpu_custom_call.1']
    #allocation7 [shape = 'u8[32768]{0}', space=vmem, size = 0x8000, scoped, tag = 'input window, operand 3, single buffered']
    #allocation8 [shape = 's32[1]{0}', space=sflag, size = 0x4, scoped, tag = 'scoped memory for tpu_custom_call.1']
    #allocation9 [shape = 'u8[32768]{0}', space=vmem, size = 0x8000, scoped, tag = 'input window, operand 5, single buffered']
    #allocation10 [shape = 'u8[8192]{0}', space=vmem, size = 0x2000, scoped, tag = 'output window, operand 0, single buffered']
    %12 = vsyncpa [#allocation5], 0
    %13 = vsyncpa [#allocation8], 0
    %14 = vsyncpa [#allocation6], 0
    // Predicated region
    $region2: #{tpu_custom_call.1} parent=1 // pred_check
      _
    $region3: #{tpu_custom_call.1} parent=1 // pred_check_branch
      %16 = sbr.rel (0) target = $region5
    $region4: #{tpu_custom_call.1} parent=1 // pred_region
      %s18 = ssub.s32 256, 256
      %19 = vsyncadd [#allocation5], %s18
      %s20 = sshll.u32 [#allocation4], 4
      %s21 = int_to_ptr.vmem [resolvable:$true] %s20
      %26 = dma.hbm_to_vmem [thread:$0]  %s0, 256, %s21, [#allocation5], 128, 128, 8
    $region5: #{tpu_custom_call.1} parent=1 // pred_fallthru
      _
    // Predicated region
    $region6: #{tpu_custom_call.1} parent=1 // pred_check
      _
    $region7: #{tpu_custom_call.1} parent=1 // pred_check_branch
      %28 = sbr.rel (0) target = $region9
    $region8: #{tpu_custom_call.1} parent=1 // pred_region
      _
    $region9: #{tpu_custom_call.1} parent=1 // pred_fallthru
      _
    // Predicated region
    $region10: #{tpu_custom_call.1} parent=1 // pred_check
      _
    $region11: #{tpu_custom_call.1} parent=1 // pred_check_branch
      %30 = sbr.rel (0) target = $region13
    $region12: #{tpu_custom_call.1} parent=1 // pred_region
      _
    $region13: #{tpu_custom_call.1} parent=1 // pred_fallthru
      _
    // Predicated region
    $region14: #{tpu_custom_call.1} parent=1 // pred_check
      _
    $region15: #{tpu_custom_call.1} parent=1 // pred_check_branch
      %32 = sbr.rel (0) target = $region17
    $region16: #{tpu_custom_call.1} parent=1 // pred_region
      %s34 = ssub.s32 1024, 1024
      %35 = vsyncadd [#allocation8], %s34
      %s36 = sshll.u32 [#allocation7], 4
      %s37 = int_to_ptr.vmem [resolvable:$true] %s36
      %42 = dma.hbm_to_vmem [thread:$0]  %s3, 1024, %s37, [#allocation8], 64, 64, 4
    $region17: #{tpu_custom_call.1} parent=1 // pred_fallthru
      _
    // Predicated region
    $region18: #{tpu_custom_call.1} parent=1 // pred_check
      _
    $region19: #{tpu_custom_call.1} parent=1 // pred_check_branch
      %44 = sbr.rel (0) target = $region21
    $region20: #{tpu_custom_call.1} parent=1 // pred_region
      _
    $region21: #{tpu_custom_call.1} parent=1 // pred_fallthru
      _
    // Predicated region
    $region22: #{tpu_custom_call.1} parent=1 // pred_check
      _
    $region23: #{tpu_custom_call.1} parent=1 // pred_check_branch
      %46 = sbr.rel (0) target = $region25
    $region24: #{tpu_custom_call.1} parent=1 // pred_region
      %s48 = ssub.s32 1024, 1024
      %49 = vsyncadd [#allocation8], %s48
      %s50 = sshll.u32 [#allocation9], 4
      %s51 = int_to_ptr.vmem [resolvable:$true] %s50
      %56 = dma.hbm_to_vmem [thread:$0]  %s5, 1024, %s51, [#allocation8], 64, 64, 4
    $region25: #{tpu_custom_call.1} parent=1 // pred_fallthru
      _
    // Predicated region
    $region26: #{tpu_custom_call.1} parent=1 // pred_check
      _
    $region27: #{tpu_custom_call.1} parent=1 // pred_check_branch
      %58 = sbr.rel (0) target = $region29
    $region28: #{tpu_custom_call.1} parent=1 // pred_region
      _
    $region29: #{tpu_custom_call.1} parent=1 // pred_fallthru
      _
    // Predicated region
    $region30: #{tpu_custom_call.1} parent=1 // pred_check
      _
    $region31: #{tpu_custom_call.1} parent=1 // pred_check_branch
      %60 = sbr.rel (0) target = $region33
    $region32: #{tpu_custom_call.1} parent=1 // pred_region
      %61 = dma.done [#allocation5], 256
    $region33: #{tpu_custom_call.1} parent=1 // pred_fallthru
      _
    // Predicated region
    $region34: #{tpu_custom_call.1} parent=1 // pred_check
      _
    $region35: #{tpu_custom_call.1} parent=1 // pred_check_branch
      %63 = sbr.rel (0) target = $region37
    $region36: #{tpu_custom_call.1} parent=1 // pred_region
      %64 = dma.done [#allocation8], 1024
    $region37: #{tpu_custom_call.1} parent=1 // pred_fallthru
      _
    // Predicated region
    $region38: #{tpu_custom_call.1} parent=1 // pred_check
      _
    $region39: #{tpu_custom_call.1} parent=1 // pred_check_branch
      %66 = sbr.rel (0) target = $region41
    $region40: #{tpu_custom_call.1} parent=1 // pred_region
      %67 = dma.done [#allocation8], 1024
    $region41: #{tpu_custom_call.1} parent=1 // pred_fallthru
      _
    %p69 = scmp.eq.s32.totalorder 0, 0
    // Predicated region
    $region42: #{tpu_custom_call.1} parent=1 // pred_check
      %p70 = pneg %p69
    $region43: #{tpu_custom_call.1} parent=1 // pred_check_branch
      %72 = sbr.rel (%p70) target = $region45
    $region44: #{tpu_custom_call.1} parent=1 // pred_region
      %v73 = vld [vmem:[#allocation4] sm:$0xff]
      %v74 = vld [vmem:[#allocation4 + $0x8] sm:$0xff]
      %75 = vadd.xlane.f32.xlu0 %v73
      %v76 = vpop.xlane.xlu0 %75
      %77 = vadd.xlane.f32.xlu0 %v74
      %v78 = vpop.xlane.xlu0 %77
      %v79 = vmul.f32 %v73, %v73
      %v80 = vmul.f32 %v74, %v74
      %81 = vadd.xlane.f32.xlu0 %v79
      %v82 = vpop.xlane.xlu0 %81
      %83 = vadd.xlane.f32.xlu0 %v80
      %v84 = vpop.xlane.xlu0 %83
      %v85 = vmul.f32 %v76, 0.03125
      %v86 = vmul.f32 %v78, 0.03125
      %v87 = vmul.f32 %v82, 0.03125
      %v88 = vmul.f32 %v84, 0.03125
      %v89 = vmul.f32 %v85, %v85
      %v90 = vmul.f32 %v86, %v86
      %v91 = vsub.f32 %v87, %v89
      %v92 = vsub.f32 %v88, %v90
      %v93 = vsub.f32 %v73, %v85
      %v94 = vsub.f32 %v74, %v86
      %v95 = vadd.f32 %v91, 1e-06
      %v96 = vadd.f32 %v92, 1e-06
      %v97 = vrsqrt.pop %v95
      %v98 = vrsqrt.pop %v96
      %v99 = vmul.f32 %v93, %v97
      %v100 = vmul.f32 %v94, %v98
      %v101 = vld [vmem:[%s1] sm:$0x1]
      %v103 = vlaneseq
      %v104 = vshrl.u32 %v103, 7
      %v105 = vsub.s32 0, %v104
      %v106 = vrot.slane %v101, %v105
      %v108 = vmul.f32 %v99, %v106
      %v109 = vmul.f32 %v100, %v106
      %v110 = vld [vmem:[%s2] sm:$0x1]
      %v112 = vlaneseq
      %v113 = vshrl.u32 %v112, 7
      %v114 = vsub.s32 0, %v113
      %v115 = vrot.slane %v110, %v114
      %v117 = vadd.f32 %v108, %v115
      %v118 = vadd.f32 %v109, %v115
      %v119 = vpack.c.bf16 %v118, %v117
      %120 = vst [vmem:[#allocation2] sm:$0xff] %v119
      %121 = vst [vmem:[#allocation3] sm:$0xff] 0.0
      %122 = vst [vmem:[#allocation3 + $0x8] sm:$0xff] 0.0
    $region45: #{tpu_custom_call.1} parent=1 // pred_fallthru
      _
    %v123 = vld [vmem:[#allocation2] sm:$0xff]
    %v124 = vld [vmem:[#allocation7] sm:$0xf]
    %v125 = vld [vmem:[#allocation7 + $0x4] sm:$0xf]
    %v126 = vld [vmem:[#allocation7 + $0x8] sm:$0xf]
    %v127 = vld [vmem:[#allocation7 + $0xc] sm:$0xf]
    %v128 = vld [vmem:[#allocation7 + $0x10] sm:$0xf]
    %v129 = vld [vmem:[#allocation7 + $0x14] sm:$0xf]
    %v130 = vld [vmem:[#allocation7 + $0x18] sm:$0xf]
    %v131 = vld [vmem:[#allocation7 + $0x1c] sm:$0xf]
    %v132 = vld [vmem:[#allocation7 + $0x20] sm:$0xf]
    %v133 = vld [vmem:[#allocation7 + $0x24] sm:$0xf]
    %v134 = vld [vmem:[#allocation7 + $0x28] sm:$0xf]
    %v135 = vld [vmem:[#allocation7 + $0x2c] sm:$0xf]
    %v136 = vld [vmem:[#allocation7 + $0x30] sm:$0xf]
    %v137 = vld [vmem:[#allocation7 + $0x34] sm:$0xf]
    %v138 = vld [vmem:[#allocation7 + $0x38] sm:$0xf]
    %v139 = vld [vmem:[#allocation7 + $0x3c] sm:$0xf]
    %v140 = vld [vmem:[%s4] sm:$0x1]
    %v142 = vlaneseq
    %v143 = vshrl.u32 %v142, 7
    %v144 = vsub.s32 0, %v143
    %v145 = vrot.slane %v140, %v144
    %v163 = vunpack.c.l.b16 %v124
    %v164 = vunpack.c.l.b16 %v125
    %v165 = vunpack.c.l.b16 %v126
    %v166 = vunpack.c.l.b16 %v127
    %v167 = vunpack.c.l.b16 %v128
    %v168 = vunpack.c.l.b16 %v129
    %v169 = vunpack.c.l.b16 %v130
    %v170 = vunpack.c.l.b16 %v131
    %v171 = vunpack.c.l.b16 %v132
    %v172 = vunpack.c.l.b16 %v133
    %v173 = vunpack.c.l.b16 %v134
    %v174 = vunpack.c.l.b16 %v135
    %v175 = vunpack.c.l.b16 %v136
    %v176 = vunpack.c.l.b16 %v137
    %v177 = vunpack.c.l.b16 %v138
    %v178 = vunpack.c.l.b16 %v139
    %v179 = vpack.c.b16 %v164, %v163
    %v180 = vpack.c.b16 %v166, %v165
    %v181 = vpack.c.b16 %v168, %v167
    %v182 = vpack.c.b16 %v170, %v169
    %v183 = vpack.c.b16 %v172, %v171
    %v184 = vpack.c.b16 %v174, %v173
    %v185 = vpack.c.b16 %v176, %v175
    %v186 = vpack.c.b16 %v178, %v177
    %195 = vmatprep.subr.bf16.mxu0 0
    %196 = vmatpush1.bf16.msra.mxu0 %v179
    %197 = vmatprep.subr.bf16.mxu0 0
    %198 = vmatpush1.bf16.msra.mxu0 %v180
    %199 = vmatprep.subr.bf16.mxu0 0
    %200 = vmatpush1.bf16.msra.mxu0 %v181
    %201 = vmatprep.subr.bf16.mxu0 0
    %202 = vmatpush1.bf16.msra.mxu0 %v182
    %203 = vmatprep.subr.bf16.mxu0 0
    %204 = vmatpush1.bf16.msra.mxu0 %v183
    %205 = vmatprep.subr.bf16.mxu0 0
    %206 = vmatpush1.bf16.msra.mxu0 %v184
    %207 = vmatprep.subr.bf16.mxu0 0
    %208 = vmatpush1.bf16.msra.mxu0 %v185
    %209 = vmatprep.subr.bf16.mxu0 0
    %210 = vmatpush1.bf16.msra.mxu0 %v186
    %211 = vmatprep.subr.bf16.mxu0 0
    %212 = vmatpush1.bf16.msra.mxu0 0
    %213 = vmatprep.subr.bf16.mxu0 0
    %214 = vmatpush1.bf16.msra.mxu0 0
    %215 = vmatprep.subr.bf16.mxu0 0
    %216 = vmatpush1.bf16.msra.mxu0 0
    %217 = vmatprep.subr.bf16.mxu0 0
    %218 = vmatpush1.bf16.msra.mxu0 0
    %219 = vmatprep.subr.bf16.mxu0 0
    %220 = vmatpush1.bf16.msra.mxu0 0
    %221 = vmatprep.subr.bf16.mxu0 0
    %222 = vmatpush1.bf16.msra.mxu0 0
    %223 = vmatprep.subr.bf16.mxu0 0
    %224 = vmatpush1.bf16.msra.mxu0 0
    %225 = vmatprep.subr.bf16.mxu0 0
    %226 = vmatpush1.bf16.msra.mxu0 0
    %227 = vmatprep.mubr.bf16.mxu0 0
    %228 = vmatmul.mubr.bf16.gmra.mrb[0].mxu0 %v123
    %v229 = vpop.f32.mrb[0].mxu0
    %v230 = vadd.f32 %v145, %v229
    %v231 = vpop.f32.mrb[0].mxu0
    %v232 = vpop.f32.mrb[0].mxu0
    %v233 = vadd.f32 %v145, %v232
    %v234 = vpop.f32.mrb[0].mxu0
    %235 = vdwg.mxu0
    %v236 = vmax.f32 %v230, 0.0
    %v237 = vmax.f32 %v233, 0.0
    %v238 = vld [vmem:[#allocation3] sm:$0xff]
    %v239 = vld [vmem:[#allocation3 + $0x8] sm:$0xff]
    %v240 = vpack.c.bf16 %v237, %v236
    %v241 = vld [vmem:[#allocation9] sm:$0xf]
    %v242 = vld [vmem:[#allocation9 + $0x4] sm:$0xf]
    %v243 = vld [vmem:[#allocation9 + $0x8] sm:$0xf]
    %v244 = vld [vmem:[#allocation9 + $0xc] sm:$0xf]
    %v245 = vld [vmem:[#allocation9 + $0x10] sm:$0xf]
    %v246 = vld [vmem:[#allocation9 + $0x14] sm:$0xf]
    %v247 = vld [vmem:[#allocation9 + $0x18] sm:$0xf]
    %v248 = vld [vmem:[#allocation9 + $0x1c] sm:$0xf]
    %v249 = vld [vmem:[#allocation9 + $0x20] sm:$0xf]
    %v250 = vld [vmem:[#allocation9 + $0x24] sm:$0xf]
    %v251 = vld [vmem:[#allocation9 + $0x28] sm:$0xf]
    %v252 = vld [vmem:[#allocation9 + $0x2c] sm:$0xf]
    %v253 = vld [vmem:[#allocation9 + $0x30] sm:$0xf]
    %v254 = vld [vmem:[#allocation9 + $0x34] sm:$0xf]
    %v255 = vld [vmem:[#allocation9 + $0x38] sm:$0xf]
    %v256 = vld [vmem:[#allocation9 + $0x3c] sm:$0xf]
    %v273 = vunpack.c.l.b16 %v241
    %v274 = vunpack.c.l.b16 %v242
    %v275 = vunpack.c.l.b16 %v243
    %v276 = vunpack.c.l.b16 %v244
    %v277 = vunpack.c.l.b16 %v245
    %v278 = vunpack.c.l.b16 %v246
    %v279 = vunpack.c.l.b16 %v247
    %v280 = vunpack.c.l.b16 %v248
    %v281 = vunpack.c.l.b16 %v249
    %v282 = vunpack.c.l.b16 %v250
    %v283 = vunpack.c.l.b16 %v251
    %v284 = vunpack.c.l.b16 %v252
    %v285 = vunpack.c.l.b16 %v253
    %v286 = vunpack.c.l.b16 %v254
    %v287 = vunpack.c.l.b16 %v255
    %v288 = vunpack.c.l.b16 %v256
    %v289 = vpack.c.b16 %v274, %v273
    %v290 = vpack.c.b16 %v276, %v275
    %v291 = vpack.c.b16 %v278, %v277
    %v292 = vpack.c.b16 %v280, %v279
    %v293 = vpack.c.b16 %v282, %v281
    %v294 = vpack.c.b16 %v284, %v283
    %v295 = vpack.c.b16 %v286, %v285
    %v296 = vpack.c.b16 %v288, %v287
    %305 = vmatprep.subr.bf16.mxu0 0
    %306 = vmatpush1.bf16.msra.mxu0 %v289
    %307 = vmatprep.subr.bf16.mxu0 0
    %308 = vmatpush1.bf16.msra.mxu0 %v290
    %309 = vmatprep.subr.bf16.mxu0 0
    %310 = vmatpush1.bf16.msra.mxu0 %v291
    %311 = vmatprep.subr.bf16.mxu0 0
    %312 = vmatpush1.bf16.msra.mxu0 %v292
    %313 = vmatprep.subr.bf16.mxu0 0
    %314 = vmatpush1.bf16.msra.mxu0 %v293
    %315 = vmatprep.subr.bf16.mxu0 0
    %316 = vmatpush1.bf16.msra.mxu0 %v294
    %317 = vmatprep.subr.bf16.mxu0 0
    %318 = vmatpush1.bf16.msra.mxu0 %v295
    %319 = vmatprep.subr.bf16.mxu0 0
    %320 = vmatpush1.bf16.msra.mxu0 %v296
    %321 = vmatprep.subr.bf16.mxu0 0
    %322 = vmatpush1.bf16.msra.mxu0 0
    %323 = vmatprep.subr.bf16.mxu0 0
    %324 = vmatpush1.bf16.msra.mxu0 0
    %325 = vmatprep.subr.bf16.mxu0 0
    %326 = vmatpush1.bf16.msra.mxu0 0
    %327 = vmatprep.subr.bf16.mxu0 0
    %328 = vmatpush1.bf16.msra.mxu0 0
    %329 = vmatprep.subr.bf16.mxu0 0
    %330 = vmatpush1.bf16.msra.mxu0 0
    %331 = vmatprep.subr.bf16.mxu0 0
    %332 = vmatpush1.bf16.msra.mxu0 0
    %333 = vmatprep.subr.bf16.mxu0 0
    %334 = vmatpush1.bf16.msra.mxu0 0
    %335 = vmatprep.subr.bf16.mxu0 0
    %336 = vmatpush1.bf16.msra.mxu0 0
    %337 = vmatprep.mubr.bf16.mxu0 0
    %338 = vmatmul.mubr.bf16.gmra.mrb[0].mxu0 %v240
    %v339 = vpop.f32.mrb[0].mxu0
    %v340 = vadd.f32 0.0, %v339
    %v341 = vpop.f32.mrb[0].mxu0
    %v342 = vpop.f32.mrb[0].mxu0
    %v343 = vadd.f32 0.0, %v342
    %v344 = vpop.f32.mrb[0].mxu0
    %345 = vdwg.mxu0
    %v346 = vadd.f32 %v238, %v340
    %v347 = vadd.f32 %v239, %v343
    %348 = vst [vmem:[#allocation3] sm:$0xff] %v346
    %349 = vst [vmem:[#allocation3 + $0x8] sm:$0xff] %v347
    // Predicated region
    $region46: #{tpu_custom_call.1} parent=1 // pred_check
      %p350 = pneg %p69
    $region47: #{tpu_custom_call.1} parent=1 // pred_check_branch
      %352 = sbr.rel (%p350) target = $region49
    $region48: #{tpu_custom_call.1} parent=1 // pred_region
      %v353 = vld [vmem:[#allocation3] sm:$0xff]
      %v354 = vld [vmem:[#allocation3 + $0x8] sm:$0xff]
      %v355 = vld [vmem:[%s6] sm:$0x1]
      %v357 = vlaneseq
      %v358 = vshrl.u32 %v357, 7
      %v359 = vsub.s32 0, %v358
      %v360 = vrot.slane %v355, %v359
      %v362 = vadd.f32 %v353, %v360
      %v363 = vadd.f32 %v354, %v360
      %v364 = vld [vmem:[#allocation4] sm:$0xff]
      %v365 = vld [vmem:[#allocation4 + $0x8] sm:$0xff]
      %v366 = vadd.f32 %v362, %v364
      %v367 = vadd.f32 %v363, %v365
      %368 = vst [vmem:[#allocation10] sm:$0xff] %v366
      %369 = vst [vmem:[#allocation10 + $0x8] sm:$0xff] %v367
    $region49: #{tpu_custom_call.1} parent=1 // pred_fallthru
      _
    // Predicated region
    $region50: #{tpu_custom_call.1} parent=1 // pred_check
      _
    $region51: #{tpu_custom_call.1} parent=1 // pred_check_branch
      %371 = sbr.rel (0) target = $region53
    $region52: #{tpu_custom_call.1} parent=1 // pred_region
      %s373 = ssub.s32 256, 256
      %374 = vsyncadd [#allocation6], %s373
      %s375 = sshll.u32 [#allocation10], 4
      %s376 = int_to_ptr.vmem [resolvable:$true] %s375
      %381 = dma.vmem_to_hbm [thread:$0]  %s376, 256, %s7, [#allocation6], 128, 128, 8
    $region53: #{tpu_custom_call.1} parent=1 // pred_fallthru
      _
    // Predicated region
    $region54: #{tpu_custom_call.1} parent=1 // pred_check
      _
    $region55: #{tpu_custom_call.1} parent=1 // pred_check_branch
      %383 = sbr.rel (0) target = $region57
    $region56: #{tpu_custom_call.1} parent=1 // pred_region
      %384 = dma.done [#allocation6], 256
    $region57: #{tpu_custom_call.1} parent=1 // pred_fallthru
      _
    %385 = vsyncpa [#allocation5], 1
    %386 = vsyncpa [#allocation8], 1
    %387 = vsyncpa [#allocation6], 1

</llo_original>
